<compile_context>
chip_gen: v5e
topology: v5e:2x2
jax: 0.10.0
libtpu: 0.0.40
codegen_flags: <defaults>
</compile_context>

<pallas_src>
import jax
import jax.numpy as jnp
from jax.experimental import pallas as pl
from jax.experimental.pallas import tpu as pltpu

LANE = 128      # TPU vreg lane width
SUBLANE = 8     # f32 sublane count


def _round_up(n, m):
    return (n + m - 1) // m * m


# ----------------------------------------------------------------------------
# One-time weight preparation (outside the per-call hot path)
# ----------------------------------------------------------------------------
def prepare_koopman_weights(A_w, B_w, compute_dtype=jnp.float32):
    """Fuse lA/lB weights into a single pre-transposed, lane-padded operand.

    A_w: [Nk, Nk]     (PyTorch lA.weight, stored [out, in])
    B_w: [Nk, u_dim]  (PyTorch lB.weight, stored [out, in])

    Returns W_T: [Nk + u_dim, Nk_pad] with
        lA(x) + lB(u) == ([x | u] @ W_T)[:, :Nk]
    On v6e, pass compute_dtype=jnp.bfloat16 (MXU-native; f32 accumulation is
    kept inside the kernel via preferred_element_type).
    """
    Nk = A_w.shape[0]
    Nk_pad = _round_up(Nk, LANE)
    W_T = jnp.concatenate([A_w.T, B_w.T], axis=0)        # [Nk + u_dim, Nk]
    W_T = jnp.pad(W_T, ((0, 0), (0, Nk_pad - Nk)))       # lane-dense output dim
    return W_T.astype(compute_dtype)


# ----------------------------------------------------------------------------
# Pallas kernel: out = [x | u] @ W_T   (single fused MXU matmul)
# ----------------------------------------------------------------------------
def koopman_forward_kernel(xu_ref, wt_ref, o_ref):
    # xu_ref: [bB, Nk+u_dim]      VMEM  (batch tile of concatenated activations)
    # wt_ref: [Nk+u_dim, Nk_pad]  VMEM  (resident across the whole grid)
    # o_ref:  [bB, Nk_pad]        VMEM  (128-wide lane-dense store, no vst.msk)
    o_ref[...] = jnp.dot(
        xu_ref[...], wt_ref[...], preferred_element_type=jnp.float32
    ).astype(o_ref.dtype)


def koopman_forward(x, u, W_T, Nk, *, block_b=256):
    """Equivalent of Network.forward: lA(x) + lB(u), as one fused matmul."""
    B = x.shape[0]
    K, Nk_pad = W_T.shape

    # Cheap per-call activation concat; the weight fusion was done once in
    # prepare_koopman_weights, so there is no per-call transpose anywhere.
    xu = jnp.concatenate([x, u], axis=-1).astype(W_T.dtype)   # [B, K]

    # Tile the batch (rollouts / MPC can fold timesteps into the batch axis to
    # amortize pallas_call dispatch); pad rows to a sublane/tile multiple.
    bB = min(block_b, _round_up(B, SUBLANE))
    B_pad = _round_up(B, bB)
    if B_pad != B:
        xu = jnp.pad(xu, ((0, B_pad - B), (0, 0)))

    out = pl.pallas_call(
        koopman_forward_kernel,
        out_shape=jax.ShapeDtypeStruct((B_pad, Nk_pad), jnp.float32),
        grid=(B_pad // bB,),
        in_specs=[
            pl.BlockSpec((bB, K), lambda i: (i, 0)),       # batch tiles stream
            pl.BlockSpec((K, Nk_pad), lambda i: (0, 0)),   # weights pinned in VMEM
        ],
        out_specs=pl.BlockSpec((bB, Nk_pad), lambda i: (i, 0)),
        compiler_params=pltpu.CompilerParams(
            # batch axis is independent -> shards across v7x's 2 TensorCores,
            # harmless on single-TC v5e/v6e.
            dimension_semantics=("parallel",),
        ),
    )(xu, W_T)

    return out[:B, :Nk]


# ----------------------------------------------------------------------------
# Deterministic parameter initialization (mirrors Network.__init__ semantics)
# ----------------------------------------------------------------------------
def init_params(key, encode_layers, Nkoopman, u_dim):
    keys = jax.random.split(key, 4)

    # encode_net params (not used by forward(); built for completeness).
    # TODO(synk): encode_only()/encode() (ReLU MLP) are not part of forward()
    # and are not implemented as Pallas kernels here.
    enc_params = []
    for i in range(len(encode_layers) - 1):
        fan_in = encode_layers[i]
        bound = 1.0 / jnp.sqrt(fan_in)
        w = jax.random.uniform(
            jax.random.fold_in(keys[0], i),
            (encode_layers[i + 1], fan_in), jnp.float32, -bound, bound)
        b = jax.random.uniform(
            jax.random.fold_in(keys[1], i),
            (encode_layers[i + 1],), jnp.float32, -bound, bound)
        enc_params.append((w, b))

    # lA: gaussian_init_(Nkoopman, std=1) draws N(0, std/n_units) = N(0, 1/Nk),
    # then orthogonalize via SVD and scale by 0.9.
    A0 = jax.random.normal(keys[2], (Nkoopman, Nkoopman), jnp.float32) * (1.0 / Nkoopman)
    U, _, Vt = jnp.linalg.svd(A0, full_matrices=False)
    A_w = (U @ Vt) * 0.9  # [Nk, Nk]

    # lB: default nn.Linear init (bias=False), fan_in = u_dim.
    bound = 1.0 / jnp.sqrt(u_dim)
    B_w = jax.random.uniform(keys[3], (Nkoopman, u_dim), jnp.float32, -bound, bound)

    return enc_params, A_w, B_w


if __name__ == "__main__":
    key = jax.random.PRNGKey(0)
    k_x, k_u, k_p = jax.random.split(key, 3)

    # Small shapes consistent with the module: Nkoopman = state_dim + latent_dim
    batch = 8
    Nkoopman = 32
    u_dim = 4
    encode_layers = [8, 64, Nkoopman - 8]  # example encoder spec (unused by forward)

    enc_params, A_w, B_w = init_params(k_p, encode_layers, Nkoopman, u_dim)

    x = jax.random.normal(k_x, (batch, Nkoopman), jnp.float32)
    u = jax.random.normal(k_u, (batch, u_dim), jnp.float32)

    # One-time weight fusion / pre-transpose (outside the hot path).
    W_T = prepare_koopman_weights(A_w, B_w)

    fwd = jax.jit(lambda xx, uu, wt: koopman_forward(xx, uu, wt, Nkoopman))
    out = jax.block_until_ready(fwd(x, u, W_T))

    # reference check (plain JAX)
    ref = x @ A_w.T + u @ B_w.T
    assert out.shape == ref.shape, "shape mismatch vs reference"
    assert jnp.allclose(out, ref, atol=1e-5), "mismatch vs reference"

    print("KERNEL_OK")
</pallas_src>

<mosaic_0001>
module attributes {stable_mosaic.version = 11 : i64} {
  func.func @koopman_forward_kernel(%arg0: i32, %arg1: memref<8x36xf32, #tpu.memory_space<vmem>>, %arg2: memref<36x128xf32, #tpu.memory_space<vmem>>, %arg3: memref<8x128xf32, #tpu.memory_space<vmem>>) attributes {dimension_semantics = [#tpu.dimension_semantics<parallel>], iteration_bounds = array<i64: 1>, scalar_prefetch = 0 : i64, scratch_operands = 0 : i64, tpu.core_type = #tpu.core_type<tc>, window_params = [{transform_indices = @transform_0, window_bounds = array<i64: 8, 36>}, {pipeline_mode = #tpu.pipeline_mode<synchronous>, transform_indices = @transform_1, window_bounds = array<i64: 36, 128>}, {transform_indices = @transform_2, window_bounds = array<i64: 8, 128>}]} {
    %c0 = arith.constant 0 : index
    %c0_0 = arith.constant 0 : index
    %0 = vector.load %arg1[%c0, %c0_0] : memref<8x36xf32, #tpu.memory_space<vmem>>, vector<8x36xf32>
    %c0_1 = arith.constant 0 : index
    %c0_2 = arith.constant 0 : index
    %1 = vector.load %arg2[%c0_1, %c0_2] : memref<36x128xf32, #tpu.memory_space<vmem>>, vector<36x128xf32>
    %cst = arith.constant dense<0.000000e+00> : vector<8x128xf32>
    %2 = tpu.matmul %0, %1, %cst {dimension_numbers = #tpu.dot_dimension_numbers<[1], [0], [0], [1], [0, 0, 1, 1], [], []>} : vector<8x36xf32>, vector<36x128xf32>, vector<8x128xf32> -> vector<8x128xf32>
    %c0_3 = arith.constant 0 : index
    %c0_4 = arith.constant 0 : index
    %3 = vector.load %arg3[%c0_3, %c0_4] : memref<8x128xf32, #tpu.memory_space<vmem>>, vector<8x128xf32>
    tpu.vector_store %arg3[%c0_3, %c0_4], %2 {strides = array<i32>} : memref<8x128xf32, #tpu.memory_space<vmem>>, vector<8x128xf32>,
    return
  }
  func.func @transform_0(%arg0: i32) -> (i32, i32) {
    %c0_i32 = arith.constant 0 : i32
    %c0_i32_0 = arith.constant 0 : i32
    return %arg0, %c0_i32 : i32, i32
  }
  func.func @transform_1(%arg0: i32) -> (i32, i32) {
    %c0_i32 = arith.constant 0 : i32
    %c0_i32_0 = arith.constant 0 : i32
    %c0_i32_1 = arith.constant 0 : i32
    return %c0_i32, %c0_i32_0 : i32, i32
  }
  func.func @transform_2(%arg0: i32) -> (i32, i32) {
    %c0_i32 = arith.constant 0 : i32
    %c0_i32_0 = arith.constant 0 : i32
    return %arg0, %c0_i32 : i32, i32
  }
}

</mosaic_0001>

<llo_original>
// kernel: _lambda_.1
$region0: #{_lambda_.1}
  #allocation0 [shape = 'u32[]', space=smem, size = 0x4, offset = 0x4, fixed_abs, tag = 'smem constant byte address 0x4 - core index']
  #allocation1 [shape = 'u32[72,128]{1,0:T(1,128)}', space=vmem, size = 0x9000, scoped, tag = 'internal scratch']
  %s0 = inlined_call_operand.vmem [shape: f32[8,36], index: 0, kind: input, shape index: {}]
  %s1 = inlined_call_operand.hbm [shape: f32[36,128], index: 1, kind: input, shape index: {}]
  %s2 = inlined_call_operand.hbm [shape: f32[8,128], index: 2, kind: output, shape index: {}]
  %s3 = sld [smem:[#allocation0]]
  $region22: #{_lambda_.1} parent=0
    _
  %s5 = ssub.s32 1, %s3
  %s6 = scalar_select 0, %s5, %s3
  $region1: #{_lambda_.1} parent=0
    #allocation2 [shape = 'u8[20480]{0}', space=vmem, size = 0x5000, scoped, tag = 'input window, operand 1, single buffered']
    #allocation3 [shape = 's32[1]{0}', space=sflag, size = 0x4, scoped, tag = 'scoped memory for _lambda_.1']
    #allocation4 [shape = 's32[1]{0}', space=sflag, size = 0x4, scoped, tag = 'scoped memory for _lambda_.1']
    #allocation5 [shape = 'u8[4096]{0}', space=vmem, size = 0x1000, scoped, tag = 'output window, operand 0, single buffered']
    %7 = vsyncpa [#allocation3], 0
    %8 = vsyncpa [#allocation4], 0
    // Predicated region
    $region2: #{_lambda_.1} parent=1 // pred_check
      _
    $region3: #{_lambda_.1} parent=1 // pred_check_branch
      %10 = sbr.rel (0) target = $region5
    $region4: #{_lambda_.1} parent=1 // pred_region
      _
    $region5: #{_lambda_.1} parent=1 // pred_fallthru
      _
    // Predicated region
    $region6: #{_lambda_.1} parent=1 // pred_check
      _
    $region7: #{_lambda_.1} parent=1 // pred_check_branch
      %12 = sbr.rel (0) target = $region9
    $region8: #{_lambda_.1} parent=1 // pred_region
      %14 = vsyncadd [#allocation3], 0
      %s15 = sshll.u32 %s1, 4
      %s16 = int_to_ptr.hbm [resolvable:$true] %s15
      %s17 = sshll.u32 [#allocation2], 4
      %s18 = int_to_ptr.vmem [resolvable:$true] %s17
      %23 = dma.hbm_to_vmem [thread:$0]  %s16, 640, %s18, [#allocation3], 128, 128, 8
    $region9: #{_lambda_.1} parent=1 // pred_fallthru
      _
    // Predicated region
    $region10: #{_lambda_.1} parent=1 // pred_check
      _
    $region11: #{_lambda_.1} parent=1 // pred_check_branch
      %25 = sbr.rel (0) target = $region13
    $region12: #{_lambda_.1} parent=1 // pred_region
      %27 = dma.done [#allocation3], 640
    $region13: #{_lambda_.1} parent=1 // pred_fallthru
      _
    %v28 = vld [vmem:[%s0] sm:$0xff]
    %v29 = vld [vmem:[#allocation2] sm:$0xff]
    %v30 = vld [vmem:[#allocation2 + $0x8] sm:$0xff]
    %v31 = vld [vmem:[#allocation2 + $0x10] sm:$0xff]
    %v32 = vld [vmem:[#allocation2 + $0x18] sm:$0xff]
    %v33 = vld [vmem:[#allocation2 + $0x20] sm:$0xf]
    %vm34 = vcmask 293888
    %v36 = vsel %vm34, %v28, 0
    %vm38 = vcmask 1043456
    %v40 = vsel %vm38, %v33, 0
    %42 = vmatpush.msra.mxu0 0.0
    %43 = vmatpush.msra.mxu0 0.0
    %44 = vmatpush.msra.mxu0 0.0
    %45 = vmatpush.msra.mxu0 0.0
    %46 = vmatpush.msra.mxu0 0.0
    %47 = vmatpush.msra.mxu0 0.0
    %48 = vmatpush.msra.mxu0 0.0
    %49 = vmatpush.msra.mxu0 0.0
    %50 = vmatpush.msra.mxu0 0.0
    %51 = vmatpush.msra.mxu0 0.0
    %52 = vmatpush.msra.mxu0 0.0
    %53 = vmatpush.msra.mxu0 %v40
    %54 = vmatpush.msra.mxu0 %v32
    %55 = vmatpush.msra.mxu0 %v31
    %56 = vmatpush.msra.mxu0 %v30
    %57 = vmatpush.msra.mxu0 %v29
    %58 = vmatmul.f32.gmra.mxu0 %v36
    %v59 = vpop.f32.mrf.mxu0
    %v60 = vadd.f32 0.0, %v59
    %61 = vdwg.mxu0
    %62 = vst [vmem:[#allocation5] sm:$0xff] %v60
    // Predicated region
    $region14: #{_lambda_.1} parent=1 // pred_check
      _
    $region15: #{_lambda_.1} parent=1 // pred_check_branch
      %64 = sbr.rel (0) target = $region17
    $region16: #{_lambda_.1} parent=1 // pred_region
      %66 = vsyncadd [#allocation4], 0
      %s68 = sshll.u32 [#allocation5], 4
      %s69 = int_to_ptr.vmem [resolvable:$true] %s68
      %s70 = sshll.u32 %s2, 4
      %s71 = int_to_ptr.hbm [resolvable:$true] %s70
      %73 = dma.vmem_to_hbm [thread:$0]  %s69, 128, %s71, [#allocation4]
    $region17: #{_lambda_.1} parent=1 // pred_fallthru
      _
    // Predicated region
    $region18: #{_lambda_.1} parent=1 // pred_check
      _
    $region19: #{_lambda_.1} parent=1 // pred_check_branch
      %75 = sbr.rel (0) target = $region21
    $region20: #{_lambda_.1} parent=1 // pred_region
      %77 = dma.done [#allocation4], 128
    $region21: #{_lambda_.1} parent=1 // pred_fallthru
      _
    %78 = vsyncpa [#allocation3], 1
    %79 = vsyncpa [#allocation4], 1

</llo_original>
